<compile_context>
chip_gen: v6e
topology: v6e:2x2x1
jax: 0.10.0
libtpu: 0.0.40
codegen_flags: <defaults>
</compile_context>

<pallas_src>
import functools

import jax
import jax.numpy as jnp
from jax.experimental import pallas as pl
from jax.experimental.pallas import tpu as pltpu


# ----------------------------- kernel bodies --------------------------------


def _slice_copy_kernel(x_ref, o_ref, *, n_params):
    """Path B: full-row block already in VMEM; keep only the tail columns."""
    o_ref[...] = x_ref[:, n_params:]


def _dma_slice_kernel(x_hbm, o_ref, sem, *, n_params, n_out, tile_n, n_rows,
                      num_blocks):
    """Path A: DMA only the kept columns HBM -> this output VMEM block.

    The dropped columns are never read from HBM and the body is a pure
    passthrough (no in-kernel realignment).  The output writeback is still
    auto-pipelined by Pallas, so block i's read overlaps block i-1's write.
    """
    i = pl.program_id(0)
    row0 = i * tile_n
    # Statically-known number of valid rows in the last block.
    rem = n_rows - (num_blocks - 1) * tile_n

    def _copy(r0, nrows, dst):
        cp = pltpu.make_async_copy(
            x_hbm.at[pl.ds(r0, nrows), pl.ds(n_params, n_out)], dst, sem)
        cp.start()
        cp.wait()

    if rem == tile_n:                      # tile divides n: single static shape
        _copy(row0, tile_n, o_ref)
    else:
        @pl.when(i < num_blocks - 1)
        def _():
            _copy(row0, tile_n, o_ref)

        @pl.when(i == num_blocks - 1)
        def _():
            # Copy only the valid rows; Pallas masks the writeback of the
            # out-of-bounds remainder of this output block.
            _copy(row0, rem, o_ref.at[pl.ds(0, rem), :])


# -------------------------------- wrapper ------------------------------------


def dummy_forward(x, n_params, *, tile_n=None,
                  vmem_budget_bytes=12 * 1024 * 1024,
                  min_dma_row_bytes=512):
    """Pallas implementation of Dummy.forward: x[:, n_params:]."""
    n, f = x.shape
    n_params = int(n_params)
    assert 0 <= n_params < f, "n_params must leave at least one column"
    n_out = f - n_params
    itemsize = jnp.dtype(x.dtype).itemsize

    # Packed-sublane multiple for this dtype: sub-32-bit dtypes pack 2/4 rows
    # per sublane, so round row tiles to 8 (f32) / 16 (bf16) / 32 (int8/fp8).
    sublane = 8 * max(1, 4 // itemsize)

    # Path A (skip reading the dropped columns via a column-offset DMA) only
    # when the offset is lane-aligned (plain aligned DMA window) and the kept
    # chunk per row is a reasonably large contiguous burst.
    use_dma_path = (n_params > 0 and n_params % 128 == 0
                    and n_out * itemsize >= min_dma_row_bytes)

    f_read = n_out if use_dma_path else f
    per_row_bytes = (f_read + n_out) * itemsize

    # Biggest row tile that keeps the double-buffered in+out blocks under the
    # VMEM budget (well below every generation's scoped-VMEM default).
    if tile_n is None:
        tile = max(1, vmem_budget_bytes // (2 * per_row_bytes))
    else:
        tile = int(tile_n)
    tile = min(tile, n)

    # Keep >= 2 blocks (>= 4 when rows are plentiful) so the "parallel" grid
    # axis can be sharded across both v7x TensorCores and the DMA streams
    # stay pipelined, while each block stays large enough to amortize the
    # ~0.35 us per-grid-step overhead.
    if n >= 4 * 512:
        tile = min(tile, pl.cdiv(n, 4))
    elif n >= 2 * sublane:
        tile = min(tile, pl.cdiv(n, 2))

    tile = max(sublane, (tile // sublane) * sublane)   # sublane-aligned
    tile = min(tile, n)                                # full-extent fallback
    num_blocks = pl.cdiv(n, tile)
    grid = (num_blocks,)

    # Scheduling hint: actual HBM bytes for the chosen path.
    cost = pl.CostEstimate(
        flops=0, transcendentals=0,
        bytes_accessed=(n * f_read + n * n_out) * itemsize)

    out_shape = jax.ShapeDtypeStruct((n, n_out), x.dtype)
    out_spec = pl.BlockSpec((tile, n_out), lambda i: (i, 0))
    cparams = pltpu.CompilerParams(dimension_semantics=("parallel",))

    if use_dma_path:
        kernel = functools.partial(
            _dma_slice_kernel, n_params=n_params, n_out=n_out, tile_n=tile,
            n_rows=n, num_blocks=num_blocks)
        return pl.pallas_call(
            kernel,
            out_shape=out_shape,
            grid=grid,
            in_specs=[pl.BlockSpec(memory_space=pl.ANY)],
            out_specs=out_spec,
            scratch_shapes=[pltpu.SemaphoreType.DMA(())],
            compiler_params=cparams,
            cost_estimate=cost,
        )(x)

    kernel = functools.partial(_slice_copy_kernel, n_params=n_params)
    return pl.pallas_call(
        kernel,
        out_shape=out_shape,
        grid=grid,
        in_specs=[pl.BlockSpec((tile, f), lambda i: (i, 0))],
        out_specs=out_spec,
        compiler_params=cparams,
        cost_estimate=cost,
    )(x)


if __name__ == "__main__":
    key = jax.random.PRNGKey(0)
    k1, k2, k3 = jax.random.split(key, 3)

    # --- Path B: full-row read + in-kernel slice (narrow rows, unaligned
    # n_params); 250 rows -> 3 blocks of 120 (partial last block). -----------
    n1, f1, p1 = 250, 32, 8
    x1 = jax.random.normal(k1, (n1, f1), dtype=jnp.float32)
    out1 = jax.block_until_ready(dummy_forward(x1, p1))
    assert out1.shape == (n1, f1 - p1), out1.shape
    assert bool(jnp.array_equal(out1, x1[:, p1:])), "Path B mismatch"

    # n_params == 0 -> pure passthrough copy.
    out1b = jax.block_until_ready(dummy_forward(x1, 0))
    assert bool(jnp.array_equal(out1b, x1)), "passthrough mismatch"

    # --- Path A: lane-aligned column-skipping DMA (n_params % 128 == 0,
    # kept chunk >= 512 B/row), with a partial last block (200 -> 96/96/8). ---
    n2, f2, p2 = 200, 384, 128
    x2 = jax.random.normal(k2, (n2, f2), dtype=jnp.float32)
    out2 = jax.block_until_ready(dummy_forward(x2, p2))
    assert out2.shape == (n2, f2 - p2), out2.shape
    assert bool(jnp.array_equal(out2, x2[:, p2:])), "Path A mismatch"

    # --- bf16: exercises the 16-row packed-sublane rounding. -----------------
    n3, f3, p3 = 64, 32, 8
    x3 = jax.random.normal(k3, (n3, f3), dtype=jnp.bfloat16)
    out3 = jax.block_until_ready(dummy_forward(x3, p3))
    assert bool(jnp.array_equal(out3, x3[:, p3:])), "bf16 mismatch"

    print("KERNEL_OK")
</pallas_src>

<mosaic_0001>
module attributes {stable_mosaic.version = 11 : i64} {
  func.func @_slice_copy_kernel(%arg0: i32, %arg1: memref<120x32xf32, #tpu.memory_space<vmem>>, %arg2: memref<120x24xf32, #tpu.memory_space<vmem>>) attributes {dimension_semantics = [#tpu.dimension_semantics<parallel>], iteration_bounds = array<i64: 3>, scalar_prefetch = 0 : i64, scratch_operands = 0 : i64, tpu.core_type = #tpu.core_type<tc>, window_params = [{transform_indices = @transform_0, window_bounds = array<i64: 120, 32>}, {transform_indices = @transform_1, window_bounds = array<i64: 120, 24>}]} {
    %c0 = arith.constant 0 : index
    %c8 = arith.constant 8 : index
    %0 = vector.load %arg1[%c0, %c8] : memref<120x32xf32, #tpu.memory_space<vmem>>, vector<120x24xf32>
    %c0_0 = arith.constant 0 : index
    %c0_1 = arith.constant 0 : index
    %1 = vector.load %arg2[%c0_0, %c0_1] : memref<120x24xf32, #tpu.memory_space<vmem>>, vector<120x24xf32>
    tpu.vector_store %arg2[%c0_0, %c0_1], %0 {strides = array<i32>} : memref<120x24xf32, #tpu.memory_space<vmem>>, vector<120x24xf32>,
    return
  }
  func.func @transform_0(%arg0: i32) -> (i32, i32) {
    %c0_i32 = arith.constant 0 : i32
    %c0_i32_0 = arith.constant 0 : i32
    return %arg0, %c0_i32 : i32, i32
  }
  func.func @transform_1(%arg0: i32) -> (i32, i32) {
    %c0_i32 = arith.constant 0 : i32
    %c0_i32_0 = arith.constant 0 : i32
    return %arg0, %c0_i32 : i32, i32
  }
}

</mosaic_0001>

<llo_original>
// kernel: tpu_custom_call.1
$region0: #{tpu_custom_call.1}
  #allocation0 [shape = 'u32[]', space=smem, size = 0x4, offset = 0x4, fixed_abs, tag = 'smem constant byte address 0x4 - core index']
  #allocation1 [shape = 'u32[144,128]{1,0:T(1,128)}', space=vmem, size = 0x12000, scoped, tag = 'internal scratch']
  %s0 = inlined_call_operand.vmem [shape: f32[250,32], index: 0, kind: input, shape index: {}]
  %s1 = inlined_call_operand.vmem [shape: f32[250,24], index: 1, kind: output, shape index: {}]
  %s2 = sld [smem:[#allocation0]]
  $region85: #{tpu_custom_call.1} parent=0
    _
  %s4 = ssub.s32 1, %s2
  %s5 = scalar_select 0, %s4, %s2
  $region1: #{tpu_custom_call.1} parent=0
    #allocation2 [shape = 'u8[122880]{0}', space=vmem, size = 0x1e000, scoped, tag = 'output window, operand 0']
    loop: start=0, step=1, limit=5
    $region2: #{tpu_custom_call.1} parent=1 // loop_pre_header
      _
    $region3: #{tpu_custom_call.1} parent=1 // loop_header
      %s7 = sphi 0, %s11
      %p8 = scmp.ge.s32.totalorder %s7, 5
      %s17 = sphi 0, %s19
      %s20 = sphi 0, %s17
      %s21 = sphi 0, %s20
      %s37 = sphi 0, %s21
      %s43 = sphi 0, %s45
      %s46 = sphi 0, %s43
      %s47 = sphi 0, %s46
      %s63 = sphi 0, %s47
    $region4: #{tpu_custom_call.1} parent=1 // loop_header_branch
      %10 = sbr.rel (%p8) target = $region8
    $region5: #{tpu_custom_call.1} parent=1 // loop_body
      %s12 = ssub.s32 %s7, 1
      %s13 = ssub.s32 %s7, 2
      %s14 = sadd.s32 %s7, 1
      %s15 = ssub.s32 %s7, %s14
      %p16 = scmp.eq.s32.totalorder %s15, 0
      %s18 = sadd.s32 %s17, 1
      %s19 = scalar_select %p16, %s17, %s18
      %p22 = pneg %p16
      %p23 = scmp.eq.s32.totalorder %s7, 2
      %p24 = por %p22, %p23
      %p25 = scmp.ne.s32.totalorder %s17, %s20
      %p26 = scmp.eq.s32.totalorder %s7, 0
      %p27 = por %p25, %p26
      %p28 = scmp.ne.s32.totalorder %s17, %s20
      %p29 = scmp.eq.s32.totalorder %s12, 2
      %p30 = por %p28, %p29
      %p31 = scmp.ne.s32.totalorder %s20, %s21
      %p32 = scmp.eq.s32.totalorder %s12, 0
      %p33 = por %p31, %p32
      %p34 = scmp.ne.s32.totalorder %s20, %s21
      %p35 = scmp.eq.s32.totalorder %s13, 2
      %p36 = por %p34, %p35
      %p38 = scmp.ne.s32.totalorder %s21, %s37
      %p39 = scmp.eq.s32.totalorder %s13, 0
      %p40 = por %p38, %p39
      %s41 = ssub.s32 %s7, %s14
      %p42 = scmp.eq.s32.totalorder %s41, 0
      %s44 = sadd.s32 %s43, 1
      %s45 = scalar_select %p42, %s43, %s44
      %p48 = pneg %p42
      %p49 = scmp.eq.s32.totalorder %s7, 2
      %p50 = por %p48, %p49
      %p51 = scmp.ne.s32.totalorder %s43, %s46
      %p52 = scmp.eq.s32.totalorder %s7, 0
      %p53 = por %p51, %p52
      %p54 = scmp.ne.s32.totalorder %s43, %s46
      %p55 = scmp.eq.s32.totalorder %s12, 2
      %p56 = por %p54, %p55
      %p57 = scmp.ne.s32.totalorder %s46, %s47
      %p58 = scmp.eq.s32.totalorder %s12, 0
      %p59 = por %p57, %p58
      %p60 = scmp.ne.s32.totalorder %s46, %s47
      %p61 = scmp.eq.s32.totalorder %s13, 2
      %p62 = por %p60, %p61
      %p64 = scmp.ne.s32.totalorder %s47, %s63
      %p65 = scmp.eq.s32.totalorder %s13, 0
      %p66 = por %p64, %p65
      %p67 = scmp.le.s32.totalorder 1, %s7
      %p68 = scmp.lt.s32.totalorder %s7, 4
      %p69 = pnand %p67, %p68
      %p70 = pneg %p69
      // Predicated region
      $region9: #{tpu_custom_call.1} parent=5 // pred_check
        _
      $region10: #{tpu_custom_call.1} parent=5 // pred_check_branch
        %72 = sbr.rel (%p69) target = $region12
      $region11: #{tpu_custom_call.1} parent=5 // pred_region
        %s73 = ssub.s32 %s7, 1
      $region12: #{tpu_custom_call.1} parent=5 // pred_fallthru
        _
      %p74 = scmp.lt.s32.totalorder %s7, 3
      // Predicated region
      $region13: #{tpu_custom_call.1} parent=5 // pred_check
        %p75 = pneg %p74
      $region14: #{tpu_custom_call.1} parent=5 // pred_check_branch
        %77 = sbr.rel (%p75) target = $region16
      $region15: #{tpu_custom_call.1} parent=5 // pred_region
        // Predicated region
        $region17: #{tpu_custom_call.1} parent=15 // pred_check
          %p78 = pneg %p27
        $region18: #{tpu_custom_call.1} parent=15 // pred_check_branch
          %80 = sbr.rel (%p78) target = $region20
        $region19: #{tpu_custom_call.1} parent=15 // pred_region
          %s81 = smul.u32 15, %s7
          %s82 = ssub.s32 32, %s81
          %p83 = scmp.lt.s32.totalorder %s82, 15
          %s84 = scalar_select %p83, %s82, 15
          %s85 = smul.u32 128, %s84
          %p86 = scmp.lt.s32.totalorder %s81, 31
          %s87 = scalar_select %p86, %s81, 31
          %s88 = smul.addr %s87, 8
          %s89 = scalar_lea.vmem %s0, %s88
          %s90 = smul.u32 15, %s7
          %s91 = ssub.s32 32, %s90
          %p92 = scmp.lt.s32.totalorder %s91, 15
          %s93 = scalar_select %p92, %s91, 15
          %s94 = smul.u32 128, %s93
        $region20: #{tpu_custom_call.1} parent=15 // pred_fallthru
          _
      $region16: #{tpu_custom_call.1} parent=5 // pred_fallthru
        _
      %p95 = scmp.le.s32.totalorder 1, %s7
      %p96 = scmp.lt.s32.totalorder %s7, 4
      %p97 = pnand %p95, %p96
      %p98 = pneg %p97
      // Predicated region
      $region21: #{tpu_custom_call.1} parent=5 // pred_check
        _
      $region22: #{tpu_custom_call.1} parent=5 // pred_check_branch
        %100 = sbr.rel (%p97) target = $region24
      $region23: #{tpu_custom_call.1} parent=5 // pred_region
        %s101 = ssub.s32 %s7, 1
        %s102 = smul.u32 15, %s12
        %s103 = ssub.s32 32, %s102
        %p104 = scmp.lt.s32.totalorder %s103, 15
        %s105 = scalar_select %p104, %s103, 15
        %s106 = smul.u32 128, %s105
        %p107 = scmp.lt.s32.totalorder %s102, 31
        %s108 = scalar_select %p107, %s102, 31
        %s109 = smul.addr %s108, 8
        %s110 = scalar_lea.vmem %s0, %s109
        %p111 = pneg %p33
        %p112 = pneg %p30
        %p113 = pneg %p59
        %p114 = pneg %p56
        %s115 = sand.u32 %s46, 1
        %s116 = sand.u32 %s46, 1
        %s117 = smul.addr %s116, 120
        %s118 = scalar_lea.vmem [#allocation2], %s117
        %s119 = smul.u32 15, %s12
        %s120 = ssub.s32 32, %s119
        %p121 = scmp.lt.s32.totalorder %s120, 15
        %s122 = scalar_select %p121, %s120, 15
        %s123 = smul.u32 128, %s122
        %p124 = scmp.lt.s32.totalorder %s119, 31
        %s125 = scalar_select %p124, %s119, 31
        %s126 = smul.addr %s125, 8
        %s127 = scalar_lea.vmem %s0, %s126
        %s128 = smul.u32 15, %s12
        %s129 = ssub.s32 32, %s128
        %p130 = scmp.lt.s32.totalorder %s129, 15
        %s131 = scalar_select %p130, %s129, 15
        %s132 = smul.u32 128, %s131
        %s133 = smul.u32 15, %s12
        %s134 = ssub.s32 32, %s133
        %p135 = scmp.lt.s32.totalorder %s134, 15
        %s136 = scalar_select %p135, %s134, 15
        %s137 = smul.u32 128, %s136
        %v138 = vld [vmem:[%s127] sm:$0xff]
        %v139 = vld [vmem:[%s127 + $0x8] sm:$0xff]
        %v140 = vld [vmem:[%s127 + $0x10] sm:$0xff]
        %v141 = vld [vmem:[%s127 + $0x18] sm:$0xff]
        %v142 = vld [vmem:[%s127 + $0x20] sm:$0xff]
        %v143 = vld [vmem:[%s127 + $0x28] sm:$0xff]
        %v144 = vld [vmem:[%s127 + $0x30] sm:$0xff]
        %v145 = vld [vmem:[%s127 + $0x38] sm:$0xff]
        %v146 = vld [vmem:[%s127 + $0x40] sm:$0xff]
        %v147 = vld [vmem:[%s127 + $0x48] sm:$0xff]
        %v148 = vld [vmem:[%s127 + $0x50] sm:$0xff]
        %v149 = vld [vmem:[%s127 + $0x58] sm:$0xff]
        %v150 = vld [vmem:[%s127 + $0x60] sm:$0xff]
        %v151 = vld [vmem:[%s127 + $0x68] sm:$0xff]
        %v152 = vld [vmem:[%s127 + $0x70] sm:$0xff]
        %168 = vrot.lane.b32.xlu0 %v138, 120
        %v169 = vpop.permute.xlu0 %168
        %170 = vrot.lane.b32.xlu0 %v139, 120
        %v171 = vpop.permute.xlu0 %170
        %172 = vrot.lane.b32.xlu0 %v140, 120
        %v173 = vpop.permute.xlu0 %172
        %174 = vrot.lane.b32.xlu0 %v141, 120
        %v175 = vpop.permute.xlu0 %174
        %176 = vrot.lane.b32.xlu0 %v142, 120
        %v177 = vpop.permute.xlu0 %176
        %178 = vrot.lane.b32.xlu0 %v143, 120
        %v179 = vpop.permute.xlu0 %178
        %180 = vrot.lane.b32.xlu0 %v144, 120
        %v181 = vpop.permute.xlu0 %180
        %182 = vrot.lane.b32.xlu0 %v145, 120
        %v183 = vpop.permute.xlu0 %182
        %184 = vrot.lane.b32.xlu0 %v146, 120
        %v185 = vpop.permute.xlu0 %184
        %186 = vrot.lane.b32.xlu0 %v147, 120
        %v187 = vpop.permute.xlu0 %186
        %188 = vrot.lane.b32.xlu0 %v148, 120
        %v189 = vpop.permute.xlu0 %188
        %190 = vrot.lane.b32.xlu0 %v149, 120
        %v191 = vpop.permute.xlu0 %190
        %192 = vrot.lane.b32.xlu0 %v150, 120
        %v193 = vpop.permute.xlu0 %192
        %194 = vrot.lane.b32.xlu0 %v151, 120
        %v195 = vpop.permute.xlu0 %194
        %196 = vrot.lane.b32.xlu0 %v152, 120
        %v197 = vpop.permute.xlu0 %196
        %vm213 = vcmask 195584
        %214 = vst.msk [vmem:[%s118] sm:$0xff] %vm213, %v169
        %215 = vst.msk [vmem:[%s118 + $0x8] sm:$0xff] %vm213, %v171
        %216 = vst.msk [vmem:[%s118 + $0x10] sm:$0xff] %vm213, %v173
        %217 = vst.msk [vmem:[%s118 + $0x18] sm:$0xff] %vm213, %v175
        %218 = vst.msk [vmem:[%s118 + $0x20] sm:$0xff] %vm213, %v177
        %219 = vst.msk [vmem:[%s118 + $0x28] sm:$0xff] %vm213, %v179
        %220 = vst.msk [vmem:[%s118 + $0x30] sm:$0xff] %vm213, %v181
        %221 = vst.msk [vmem:[%s118 + $0x38] sm:$0xff] %vm213, %v183
        %222 = vst.msk [vmem:[%s118 + $0x40] sm:$0xff] %vm213, %v185
        %223 = vst.msk [vmem:[%s118 + $0x48] sm:$0xff] %vm213, %v187
        %224 = vst.msk [vmem:[%s118 + $0x50] sm:$0xff] %vm213, %v189
        %225 = vst.msk [vmem:[%s118 + $0x58] sm:$0xff] %vm213, %v191
        %226 = vst.msk [vmem:[%s118 + $0x60] sm:$0xff] %vm213, %v193
        %227 = vst.msk [vmem:[%s118 + $0x68] sm:$0xff] %vm213, %v195
        %228 = vst.msk [vmem:[%s118 + $0x70] sm:$0xff] %vm213, %v197
        %s229 = sand.u32 %s46, 1
        %s230 = sand.u32 %s46, 1
        %s231 = smul.addr %s230, 120
        %s232 = scalar_lea.vmem [#allocation2], %s231
        // Predicated region
        $region25: #{tpu_custom_call.1} parent=23 // pred_check
          %p233 = pneg %p56
        $region26: #{tpu_custom_call.1} parent=23 // pred_check_branch
          %235 = sbr.rel (%p233) target = $region28
        $region27: #{tpu_custom_call.1} parent=23 // pred_region
          %s236 = smul.u32 15, %s12
          %s237 = ssub.s32 32, %s236
          %p238 = scmp.lt.s32.totalorder %s237, 15
          %s239 = scalar_select %p238, %s237, 15
          %s240 = smul.u32 128, %s239
          %p241 = scmp.ne.s32.totalorder 0, %s240
          %s242 = smul.addr %s236, 8
          %s243 = scalar_lea.vmem %s1, %s242
          // Predicated region
          $region29: #{tpu_custom_call.1} parent=27 // pred_check
            %p244 = pneg %p241
          $region30: #{tpu_custom_call.1} parent=27 // pred_check_branch
            %246 = sbr.rel (%p244) target = $region32
          $region31: #{tpu_custom_call.1} parent=27 // pred_region
            // Predicated region
            $region33: #{tpu_custom_call.1} parent=31 // pred_check
              _
            $region34: #{tpu_custom_call.1} parent=31 // pred_check_branch
              %248 = sbr.rel (0) target = $region36
            $region35: #{tpu_custom_call.1} parent=31 // pred_region
              // Predicated region
              $region55: #{tpu_custom_call.1} parent=35 // pred_check
                _
              $region56: #{tpu_custom_call.1} parent=35 // pred_check_branch
                %327 = sbr.rel (0) target = $region58
              $region57: #{tpu_custom_call.1} parent=35 // pred_region
                %s328 = sdiv.u32.pop %s239, 15
                %s329 = srem.u32.pop %s239, 15
                // While loop
                $region59: #{tpu_custom_call.1} parent=57 // loop_pre_header
                  _
                $region60: #{tpu_custom_call.1} parent=57 // loop_header
                  %s331 = sphi 0, %s333
                  %p332 = scmp.ge.s32.totalorder %s331, %s328
                  %s336 = sphi 0, %s371
                  %s337 = sphi %s232, %s374
                  %s338 = sphi %s243, %s375
                $region61: #{tpu_custom_call.1} parent=57 // loop_header_branch
                  %335 = sbr.rel (%p332) target = $region65
                $region62: #{tpu_custom_call.1} parent=57 // loop_body
                  %v339 = vld [vmem:[%s337] sm:$0xff]
                  %340 = vst [vmem:[%s338] sm:$0xff] %v339
                  %v341 = vld [vmem:[%s337 + $0x8] sm:$0xff]
                  %342 = vst [vmem:[%s338 + $0x8] sm:$0xff] %v341
                  %v343 = vld [vmem:[%s337 + $0x10] sm:$0xff]
                  %344 = vst [vmem:[%s338 + $0x10] sm:$0xff] %v343
                  %v345 = vld [vmem:[%s337 + $0x18] sm:$0xff]
                  %346 = vst [vmem:[%s338 + $0x18] sm:$0xff] %v345
                  %v347 = vld [vmem:[%s337 + $0x20] sm:$0xff]
                  %348 = vst [vmem:[%s338 + $0x20] sm:$0xff] %v347
                  %v349 = vld [vmem:[%s337 + $0x28] sm:$0xff]
                  %350 = vst [vmem:[%s338 + $0x28] sm:$0xff] %v349
                  %v351 = vld [vmem:[%s337 + $0x30] sm:$0xff]
                  %352 = vst [vmem:[%s338 + $0x30] sm:$0xff] %v351
                  %v353 = vld [vmem:[%s337 + $0x38] sm:$0xff]
                  %354 = vst [vmem:[%s338 + $0x38] sm:$0xff] %v353
                  %v355 = vld [vmem:[%s337 + $0x40] sm:$0xff]
                  %356 = vst [vmem:[%s338 + $0x40] sm:$0xff] %v355
                  %v357 = vld [vmem:[%s337 + $0x48] sm:$0xff]
                  %358 = vst [vmem:[%s338 + $0x48] sm:$0xff] %v357
                  %v359 = vld [vmem:[%s337 + $0x50] sm:$0xff]
                  %360 = vst [vmem:[%s338 + $0x50] sm:$0xff] %v359
                  %v361 = vld [vmem:[%s337 + $0x58] sm:$0xff]
                  %362 = vst [vmem:[%s338 + $0x58] sm:$0xff] %v361
                  %v363 = vld [vmem:[%s337 + $0x60] sm:$0xff]
                  %364 = vst [vmem:[%s338 + $0x60] sm:$0xff] %v363
                  %v365 = vld [vmem:[%s337 + $0x68] sm:$0xff]
                  %366 = vst [vmem:[%s338 + $0x68] sm:$0xff] %v365
                  %v367 = vld [vmem:[%s337 + $0x70] sm:$0xff]
                  %368 = vst [vmem:[%s338 + $0x70] sm:$0xff] %v367
                  %s369 = sadd.s32 1, %s336
                  %p370 = scmp.ge.s32.totalorder %s369, %s328
                  %s371 = scalar_select %p370, 0, %s369
                  %s372 = smul.u32 %s371, 120
                  %s373 = smul.u32 %s371, 120
                  %s374 = scalar_lea.vmem %s232, %s372 [#allocation2]
                  %s375 = scalar_lea.vmem %s243, %s373
                $region63: #{tpu_custom_call.1} parent=57 // loop_footer
                  %s333 = sadd.s32 %s331, 1
                $region64: #{tpu_custom_call.1} parent=57 // loop_footer_branch
                  %330 = sbr.rel target = $region60
                $region65: #{tpu_custom_call.1} parent=57 // loop_exit
                  _
                %s376 = sdiv.u32.pop %s239, 15
                %s377 = srem.u32.pop %s239, 15
                %s378 = smul.u32 %s376, 15
                %s379 = smul.u32 8, %s378
                %s380 = scalar_lea.vmem %s232, %s379 [#allocation2]
                %s381 = smul.u32 8, %s378
                %s382 = scalar_lea.vmem %s243, %s381
                // While loop
                $region66: #{tpu_custom_call.1} parent=57 // loop_pre_header
                  _
                $region67: #{tpu_custom_call.1} parent=57 // loop_header
                  %s384 = sphi 0, %s386
                  %p385 = scmp.ge.s32.totalorder %s384, %s377
                  %s389 = sphi 0, %s396
                  %s390 = sphi %s380, %s399
                  %s391 = sphi %s382, %s400
                $region68: #{tpu_custom_call.1} parent=57 // loop_header_branch
                  %388 = sbr.rel (%p385) target = $region72
                $region69: #{tpu_custom_call.1} parent=57 // loop_body
                  %v392 = vld [vmem:[%s390] sm:$0xff]
                  %393 = vst [vmem:[%s391] sm:$0xff] %v392
                  %s394 = sadd.s32 1, %s389
                  %p395 = scmp.ge.s32.totalorder %s394, %s377
                  %s396 = scalar_select %p395, 0, %s394
                  %s397 = smul.u32 %s396, 8
                  %s398 = smul.u32 %s396, 8
                  %s399 = scalar_lea.vmem %s380, %s397 [#allocation2]
                  %s400 = scalar_lea.vmem %s382, %s398
                $region70: #{tpu_custom_call.1} parent=57 // loop_footer
                  %s386 = sadd.s32 %s384, 1
                $region71: #{tpu_custom_call.1} parent=57 // loop_footer_branch
                  %383 = sbr.rel target = $region67
                $region72: #{tpu_custom_call.1} parent=57 // loop_exit
                  _
              $region58: #{tpu_custom_call.1} parent=35 // pred_fallthru
                _
              // Predicated region
              $region73: #{tpu_custom_call.1} parent=35 // pred_check
                _
              $region74: #{tpu_custom_call.1} parent=35 // pred_check_branch
                %402 = sbr.rel target = $region76
              $region75: #{tpu_custom_call.1} parent=35 // pred_region
                _
              $region76: #{tpu_custom_call.1} parent=35 // pred_fallthru
                _
            $region36: #{tpu_custom_call.1} parent=31 // pred_fallthru
              _
            // Predicated region
            $region37: #{tpu_custom_call.1} parent=31 // pred_check
              _
            $region38: #{tpu_custom_call.1} parent=31 // pred_check_branch
              %250 = sbr.rel target = $region40
            $region39: #{tpu_custom_call.1} parent=31 // pred_region
              %s252 = ssub.s32 256, 1
              %s253 = sdiv.u32.pop %s239, 15
              %s254 = srem.u32.pop %s239, 15
              // While loop
              $region41: #{tpu_custom_call.1} parent=39 // loop_pre_header
                _
              $region42: #{tpu_custom_call.1} parent=39 // loop_header
                %s256 = sphi 0, %s258
                %p257 = scmp.ge.s32.totalorder %s256, %s253
                %s261 = sphi 0, %s296
                %s262 = sphi %s232, %s299
                %s263 = sphi %s243, %s300
              $region43: #{tpu_custom_call.1} parent=39 // loop_header_branch
                %260 = sbr.rel (%p257) target = $region47
              $region44: #{tpu_custom_call.1} parent=39 // loop_body
                %v264 = vld [vmem:[%s262] sm:%s252]
                %265 = vst [vmem:[%s263] sm:%s252] %v264
                %v266 = vld [vmem:[%s262 + $0x8] sm:%s252]
                %267 = vst [vmem:[%s263 + $0x8] sm:%s252] %v266
                %v268 = vld [vmem:[%s262 + $0x10] sm:%s252]
                %269 = vst [vmem:[%s263 + $0x10] sm:%s252] %v268
                %v270 = vld [vmem:[%s262 + $0x18] sm:%s252]
                %271 = vst [vmem:[%s263 + $0x18] sm:%s252] %v270
                %v272 = vld [vmem:[%s262 + $0x20] sm:%s252]
                %273 = vst [vmem:[%s263 + $0x20] sm:%s252] %v272
                %v274 = vld [vmem:[%s262 + $0x28] sm:%s252]
                %275 = vst [vmem:[%s263 + $0x28] sm:%s252] %v274
                %v276 = vld [vmem:[%s262 + $0x30] sm:%s252]
                %277 = vst [vmem:[%s263 + $0x30] sm:%s252] %v276
                %v278 = vld [vmem:[%s262 + $0x38] sm:%s252]
                %279 = vst [vmem:[%s263 + $0x38] sm:%s252] %v278
                %v280 = vld [vmem:[%s262 + $0x40] sm:%s252]
                %281 = vst [vmem:[%s263 + $0x40] sm:%s252] %v280
                %v282 = vld [vmem:[%s262 + $0x48] sm:%s252]
                %283 = vst [vmem:[%s263 + $0x48] sm:%s252] %v282
                %v284 = vld [vmem:[%s262 + $0x50] sm:%s252]
                %285 = vst [vmem:[%s263 + $0x50] sm:%s252] %v284
                %v286 = vld [vmem:[%s262 + $0x58] sm:%s252]
                %287 = vst [vmem:[%s263 + $0x58] sm:%s252] %v286
                %v288 = vld [vmem:[%s262 + $0x60] sm:%s252]
                %289 = vst [vmem:[%s263 + $0x60] sm:%s252] %v288
                %v290 = vld [vmem:[%s262 + $0x68] sm:%s252]
                %291 = vst [vmem:[%s263 + $0x68] sm:%s252] %v290
                %v292 = vld [vmem:[%s262 + $0x70] sm:%s252]
                %293 = vst [vmem:[%s263 + $0x70] sm:%s252] %v292
                %s294 = sadd.s32 1, %s261
                %p295 = scmp.ge.s32.totalorder %s294, %s253
                %s296 = scalar_select %p295, 0, %s294
                %s297 = smul.u32 %s296, 120
                %s298 = smul.u32 %s296, 120
                %s299 = scalar_lea.vmem %s232, %s297 [#allocation2]
                %s300 = scalar_lea.vmem %s243, %s298
              $region45: #{tpu_custom_call.1} parent=39 // loop_footer
                %s258 = sadd.s32 %s256, 1
              $region46: #{tpu_custom_call.1} parent=39 // loop_footer_branch
                %255 = sbr.rel target = $region42
              $region47: #{tpu_custom_call.1} parent=39 // loop_exit
                _
              %s301 = sdiv.u32.pop %s239, 15
              %s302 = srem.u32.pop %s239, 15
              %s303 = smul.u32 %s301, 15
              %s304 = smul.u32 8, %s303
              %s305 = scalar_lea.vmem %s232, %s304 [#allocation2]
              %s306 = smul.u32 8, %s303
              %s307 = scalar_lea.vmem %s243, %s306
              // While loop
              $region48: #{tpu_custom_call.1} parent=39 // loop_pre_header
                _
              $region49: #{tpu_custom_call.1} parent=39 // loop_header
                %s309 = sphi 0, %s311
                %p310 = scmp.ge.s32.totalorder %s309, %s302
                %s314 = sphi 0, %s321
                %s315 = sphi %s305, %s324
                %s316 = sphi %s307, %s325
              $region50: #{tpu_custom_call.1} parent=39 // loop_header_branch
                %313 = sbr.rel (%p310) target = $region54
              $region51: #{tpu_custom_call.1} parent=39 // loop_body
                %v317 = vld [vmem:[%s315] sm:%s252]
                %318 = vst [vmem:[%s316] sm:%s252] %v317
                %s319 = sadd.s32 1, %s314
                %p320 = scmp.ge.s32.totalorder %s319, %s302
                %s321 = scalar_select %p320, 0, %s319
                %s322 = smul.u32 %s321, 8
                %s323 = smul.u32 %s321, 8
                %s324 = scalar_lea.vmem %s305, %s322 [#allocation2]
                %s325 = scalar_lea.vmem %s307, %s323
              $region52: #{tpu_custom_call.1} parent=39 // loop_footer
                %s311 = sadd.s32 %s309, 1
              $region53: #{tpu_custom_call.1} parent=39 // loop_footer_branch
                %308 = sbr.rel target = $region49
              $region54: #{tpu_custom_call.1} parent=39 // loop_exit
                _
            $region40: #{tpu_custom_call.1} parent=31 // pred_fallthru
              _
          $region32: #{tpu_custom_call.1} parent=27 // pred_fallthru
            _
          %403 = vnop
        $region28: #{tpu_custom_call.1} parent=23 // pred_fallthru
          _
      $region24: #{tpu_custom_call.1} parent=5 // pred_fallthru
        _
      %p404 = scmp.le.s32.totalorder 2, %s7
      // Predicated region
      $region77: #{tpu_custom_call.1} parent=5 // pred_check
        %p405 = pneg %p404
      $region78: #{tpu_custom_call.1} parent=5 // pred_check_branch
        %407 = sbr.rel (%p405) target = $region80
      $region79: #{tpu_custom_call.1} parent=5 // pred_region
        %s408 = ssub.s32 %s7, 2
        // Predicated region
        $region81: #{tpu_custom_call.1} parent=79 // pred_check
          %p409 = pneg %p62
        $region82: #{tpu_custom_call.1} parent=79 // pred_check_branch
          %411 = sbr.rel (%p409) target = $region84
        $region83: #{tpu_custom_call.1} parent=79 // pred_region
          %s412 = sand.u32 %s47, 1
          %s413 = sand.u32 %s47, 1
          %s414 = smul.addr %s413, 120
          %s415 = scalar_lea.vmem [#allocation2], %s414
        $region84: #{tpu_custom_call.1} parent=79 // pred_fallthru
          _
      $region80: #{tpu_custom_call.1} parent=5 // pred_fallthru
        _
    $region6: #{tpu_custom_call.1} parent=1 // loop_footer
      %s11 = sadd.s32 1, %s7
    $region7: #{tpu_custom_call.1} parent=1 // loop_footer_branch
      %6 = sbr.rel target = $region3
    $region8: #{tpu_custom_call.1} parent=1 // loop_exit
      _

</llo_original>
